<compile_context>
chip_gen: v7x
topology: tpu7x:2x2x1
jax: 0.10.0
libtpu: 0.0.40
codegen_flags: <defaults>
</compile_context>

<pallas_src>
import functools
import inspect

import jax
import jax.numpy as jnp
from jax.experimental import pallas as pl
from jax.experimental.pallas import tpu as pltpu

_INV_SQRT2 = 0.7071067811865476


def _supports_pipeline_mode() -> bool:
    """One-time explicit feature check for pl.BlockSpec(pipeline_mode=...)."""
    if not hasattr(pl, "Buffered"):
        return False
    try:
        params = inspect.signature(pl.BlockSpec.__init__).parameters
    except (TypeError, ValueError):
        return False
    return "pipeline_mode" in params


_HAS_BUFFERED = _supports_pipeline_mode()


def _head_transform_kernel(x_ref, w_ref, b_ref, gamma_ref, beta_ref, o_ref, *,
                           eps: float, n_sub: int, sub_rows: int,
                           use_tanh_gelu: bool):
    # x_ref:     (tm, H)  matmul dtype
    # w_ref:     (H, H)   PyTorch (out, in) layout, matmul dtype
    # b/gamma/beta: (1, H) float32
    # o_ref:     (tm, H)  output dtype
    bias = b_ref[...]
    gamma = gamma_ref[...]
    beta = beta_ref[...]
    w = w_ref[...]

    def body(s, carry):
        r0 = pl.multiple_of(s * sub_rows, sub_rows)
        x = x_ref[pl.ds(r0, sub_rows), :]

        # MXU: x @ w.T with f32 accumulation (contract on the weight's last dim;
        # no wrapper-side transpose needed).
        h = jax.lax.dot_general(
            x, w,
            dimension_numbers=(((1,), (1,)), ((), ())),
            preferred_element_type=jnp.float32)
        h = h + bias

        # GELU.
        if use_tanh_gelu:
            # tanh-approximate GELU: transcendental runs on the EUP slot.
            h = jax.nn.gelu(h, approximate=True)
        else:
            # Exact erf GELU (PyTorch approximate='none'):
            #   0.5 * (h + h * erf(h / sqrt(2)))
            h = 0.5 * (h + h * jax.lax.erf(h * _INV_SQRT2))

        # LayerNorm over the hidden (last) dim -- single-pass statistics,
        # folded into a scale/shift affine.
        mean = jnp.mean(h, axis=-1, keepdims=True)
        mean_sq = jnp.mean(h * h, axis=-1, keepdims=True)
        inv_std = jax.lax.rsqrt(mean_sq - mean * mean + eps)
        out = (h - mean) * (inv_std * gamma) + beta

        o_ref[pl.ds(r0, sub_rows), :] = out.astype(o_ref.dtype)
        return carry

    # Unrolled so the LLO scheduler can overlap sub-block k's matmul with
    # sub-block k-1's epilogue.
    jax.lax.fori_loop(0, n_sub, body, None, unroll=True)


def _const_spec(shape):
    """BlockSpec for an operand whose block never changes across the grid.

    Single-buffered (pl.Buffered(1)) when supported -- the weight must not be
    double-buffered (it would double its VMEM footprint for zero benefit).
    """
    if _HAS_BUFFERED:
        return pl.BlockSpec(shape, lambda i: (0, 0),
                            pipeline_mode=pl.Buffered(1))
    return pl.BlockSpec(shape, lambda i: (0, 0))


def xlm_roberta_prediction_head_transform(
        hidden_states, dense_w, dense_b, ln_gamma, ln_beta, *,
        eps: float = 1e-5,
        tm: int = 512,
        matmul_in_bf16: bool = False,
        gelu_approximate: str = "none",
        vmem_limit_bytes: int = 32 * 1024 * 1024):
    """Fused dense + GELU + LayerNorm head transform.

    hidden_states: (batch, seq, hidden)
    dense_w:       (hidden, hidden) in PyTorch (out, in) layout; the kernel
                   computes x @ dense_w.T + dense_b directly (no transpose).
    dense_b / ln_gamma / ln_beta: (hidden,)
    eps:           pass config.layer_norm_eps (XLM-R default 1e-5; BERT-style
                   configs use 1e-12 -- do not rely on the default).
    tm:            row tile; sweep 128-512.
    matmul_in_bf16: opt-in bf16 MXU operands for f32 inputs (f32 accumulation
                   kept; bias/GELU/LN stay f32). Avoids the slow f32 MXU
                   emulation path; small numerics change.
    gelu_approximate: "none" (exact erf, XLM-R 'gelu') or "tanh"
                   ('gelu_new'/'gelu_fast'/'gelu_pytorch_tanh').
    NOTE: the weight is cast to the matmul dtype; for bf16 activations with
    f32 checkpoint weights this downcasts the weight (matches the resident-
    weight design; flag matmul_in_bf16=False + f32 inputs keeps full f32).
    """
    B, S, H = hidden_states.shape
    M = B * S
    out_dtype = hidden_states.dtype

    use_tanh_gelu = gelu_approximate == "tanh"

    # Matmul dtype: native bf16 inputs -> bf16; f32 inputs -> f32 unless the
    # caller opts into bf16 MXU operands.
    if out_dtype == jnp.bfloat16 or matmul_in_bf16:
        matmul_dtype = jnp.bfloat16
    else:
        matmul_dtype = jnp.float32

    # Weight stays in PyTorch (out, in) layout; cast once to the matmul dtype.
    w = dense_w.astype(matmul_dtype)

    # Params cast to f32 once here (not per grid step inside the kernel).
    b2d = dense_b.reshape(1, H).astype(jnp.float32)
    g2d = ln_gamma.reshape(1, H).astype(jnp.float32)
    beta2d = ln_beta.reshape(1, H).astype(jnp.float32)

    # Row-tile selection + padding so arbitrary M works.
    bf16_rows = (out_dtype == jnp.bfloat16) or (matmul_dtype == jnp.bfloat16)
    row_align = 16 if bf16_rows else 8
    m_aligned = row_align * pl.cdiv(M, row_align)

    tm_eff = min(int(tm), m_aligned)
    tm_eff = row_align * max(1, tm_eff // row_align)
    # Keep the grid >= 2 steps whenever M allows, so both v7x TensorCores get
    # work under dimension_semantics=('parallel',). No-op for larger M.
    if m_aligned <= tm_eff and (m_aligned // 2) >= row_align:
        tm_eff = row_align * max(1, (m_aligned // 2) // row_align)
    m_padded = tm_eff * pl.cdiv(M, tm_eff)

    # Intra-tile sub-blocking (MXU/VPU overlap): up to 4 sub-blocks, each a
    # multiple of the row alignment.
    n_sub = 1
    for cand in (4, 2):
        sub = tm_eff // cand
        if tm_eff % cand == 0 and sub >= row_align and sub % row_align == 0:
            n_sub = cand
            break
    sub_rows = tm_eff // n_sub

    x2d = hidden_states.reshape(M, H).astype(matmul_dtype)
    if m_padded != M:
        x2d = jnp.pad(x2d, ((0, m_padded - M), (0, 0)))

    grid = (m_padded // tm_eff,)

    out2d = pl.pallas_call(
        functools.partial(_head_transform_kernel, eps=float(eps),
                          n_sub=n_sub, sub_rows=sub_rows,
                          use_tanh_gelu=use_tanh_gelu),
        out_shape=jax.ShapeDtypeStruct((m_padded, H), out_dtype),
        grid_spec=pltpu.PrefetchScalarGridSpec(
            num_scalar_prefetch=0,
            grid=grid,
            in_specs=[
                pl.BlockSpec((tm_eff, H), lambda i: (i, 0)),   # x row-tile
                _const_spec((H, H)),                           # weight (resident)
                _const_spec((1, H)),                           # bias
                _const_spec((1, H)),                           # ln gamma
                _const_spec((1, H)),                           # ln beta
            ],
            out_specs=pl.BlockSpec((tm_eff, H), lambda i: (i, 0)),
        ),
        compiler_params=pltpu.CompilerParams(
            dimension_semantics=("parallel",),
            vmem_limit_bytes=int(vmem_limit_bytes)),
    )(x2d, w, b2d, g2d, beta2d)

    if m_padded != M:
        out2d = out2d[:M]
    return out2d.reshape(B, S, H)


def _reference(hidden_states, dense_w, dense_b, ln_gamma, ln_beta, eps=1e-5):
    h = jnp.einsum("bsh,oh->bso", hidden_states, dense_w) + dense_b
    h = 0.5 * h * (1.0 + jax.lax.erf(h / jnp.sqrt(2.0)))
    mean = jnp.mean(h, axis=-1, keepdims=True)
    var = jnp.mean((h - mean) ** 2, axis=-1, keepdims=True)
    return (h - mean) * jax.lax.rsqrt(var + eps) * ln_gamma + ln_beta


if __name__ == "__main__":
    key = jax.random.PRNGKey(0)
    k_x, k_w, k_b, k_g, k_bt = jax.random.split(key, 5)
    eps = 1e-5

    def make_params(hidden, dtype):
        w = (jax.random.normal(k_w, (hidden, hidden), jnp.float32) * 0.02).astype(dtype)
        b = (jax.random.normal(k_b, (hidden,), jnp.float32) * 0.02).astype(dtype)
        g = (1.0 + 0.1 * jax.random.normal(k_g, (hidden,), jnp.float32)).astype(dtype)
        bt = (0.1 * jax.random.normal(k_bt, (hidden,), jnp.float32)).astype(dtype)
        return w, b, g, bt

    def check(batch, seq, hidden, dtype, tm, atol, rtol, tag, **kw):
        x = jax.random.normal(k_x, (batch, seq, hidden), jnp.float32).astype(dtype)
        w, b, g, bt = make_params(hidden, dtype)
        out = xlm_roberta_prediction_head_transform(x, w, b, g, bt, eps=eps,
                                                    tm=tm, **kw)
        out = jax.block_until_ready(out)
        assert out.shape == (batch, seq, hidden), f"{tag}: bad shape"
        assert out.dtype == dtype, f"{tag}: bad dtype"
        ref = _reference(x.astype(jnp.float32), w.astype(jnp.float32),
                         b.astype(jnp.float32), g.astype(jnp.float32),
                         bt.astype(jnp.float32), eps=eps)
        assert jnp.allclose(out.astype(jnp.float32), ref, atol=atol, rtol=rtol), \
            f"{tag}: mismatch vs reference"

    # Small spec-consistent shapes (batch=2, seq=8, hidden=32), f32.
    check(2, 8, 32, jnp.float32, tm=512, atol=1e-5, rtol=1e-5, tag="f32_small")
    # Non-divisible M exercises the padding path + real (8,128) lane tiling
    # + sub-blocking with a multi-step grid.
    check(2, 12, 256, jnp.float32, tm=16, atol=1e-4, rtol=1e-4, tag="f32_padded")
    # bf16 input exercises the native bf16 MXU path with f32 accumulation.
    check(2, 8, 128, jnp.bfloat16, tm=512, atol=5e-2, rtol=5e-2, tag="bf16")
    # f32 input with opt-in bf16 MXU operands (f32 accumulation / epilogue).
    check(2, 8, 128, jnp.float32, tm=512, atol=5e-2, rtol=5e-2,
          tag="f32_bf16_matmul", matmul_in_bf16=True)

    print("KERNEL_OK")
</pallas_src>

<mosaic_0001>
module attributes {stable_mosaic.version = 11 : i64} {
  func.func @_head_transform_kernel(%arg0: i32, %arg1: memref<8x32xf32, #tpu.memory_space<vmem>>, %arg2: memref<32x32xf32, #tpu.memory_space<vmem>>, %arg3: memref<1x32xf32, #tpu.memory_space<vmem>>, %arg4: memref<1x32xf32, #tpu.memory_space<vmem>>, %arg5: memref<1x32xf32, #tpu.memory_space<vmem>>, %arg6: memref<8x32xf32, #tpu.memory_space<vmem>>) attributes {dimension_semantics = [#tpu.dimension_semantics<parallel>], iteration_bounds = array<i64: 2>, scalar_prefetch = 0 : i64, scratch_operands = 0 : i64, tpu.core_type = #tpu.core_type<tc>, window_params = [{transform_indices = @transform_0, window_bounds = array<i64: 8, 32>}, {pipeline_mode = #tpu.pipeline_mode<synchronous>, transform_indices = @transform_1, window_bounds = array<i64: 32, 32>}, {pipeline_mode = #tpu.pipeline_mode<synchronous>, transform_indices = @transform_2, window_bounds = array<i64: 1, 32>}, {pipeline_mode = #tpu.pipeline_mode<synchronous>, transform_indices = @transform_3, window_bounds = array<i64: 1, 32>}, {pipeline_mode = #tpu.pipeline_mode<synchronous>, transform_indices = @transform_4, window_bounds = array<i64: 1, 32>}, {transform_indices = @transform_5, window_bounds = array<i64: 8, 32>}]} {
    %c0 = arith.constant 0 : index
    %c0_0 = arith.constant 0 : index
    %0 = vector.load %arg3[%c0, %c0_0] : memref<1x32xf32, #tpu.memory_space<vmem>>, vector<1x32xf32>
    %c0_1 = arith.constant 0 : index
    %c0_2 = arith.constant 0 : index
    %1 = vector.load %arg4[%c0_1, %c0_2] : memref<1x32xf32, #tpu.memory_space<vmem>>, vector<1x32xf32>
    %c0_3 = arith.constant 0 : index
    %c0_4 = arith.constant 0 : index
    %2 = vector.load %arg5[%c0_3, %c0_4] : memref<1x32xf32, #tpu.memory_space<vmem>>, vector<1x32xf32>
    %c0_5 = arith.constant 0 : index
    %c0_6 = arith.constant 0 : index
    %3 = vector.load %arg2[%c0_5, %c0_6] : memref<32x32xf32, #tpu.memory_space<vmem>>, vector<32x32xf32>
    %c0_i32 = arith.constant 0 : i32
    %c8_i32 = arith.constant 8 : i32
    %4 = arith.muli %c0_i32, %c8_i32 : i32
    %5 = tpu.assume_multiple %4, 8 : i32
    %6 = arith.index_cast %5 : i32 to index
    %c0_7 = arith.constant 0 : index
    %7 = vector.load %arg1[%6, %c0_7] : memref<8x32xf32, #tpu.memory_space<vmem>>, vector<8x32xf32>
    %cst = arith.constant dense<0.000000e+00> : vector<8x32xf32>
    %8 = tpu.matmul %7, %3, %cst {dimension_numbers = #tpu.dot_dimension_numbers<[1], [1], [0], [0], [0, 0, 1, 0], [], []>} : vector<8x32xf32>, vector<32x32xf32>, vector<8x32xf32> -> vector<8x32xf32>
    %9 = vector.broadcast %0 : vector<1x32xf32> to vector<8x32xf32>
    %10 = arith.addf %8, %9 : vector<8x32xf32>
    %cst_8 = arith.constant 0.707106769 : f32
    %11 = vector.broadcast %cst_8 : f32 to vector<8x32xf32>
    %12 = arith.mulf %10, %11 : vector<8x32xf32>
    %13 = math.erf %12 : vector<8x32xf32>
    %14 = arith.mulf %10, %13 : vector<8x32xf32>
    %15 = arith.addf %10, %14 : vector<8x32xf32>
    %cst_9 = arith.constant 5.000000e-01 : f32
    %16 = vector.broadcast %cst_9 : f32 to vector<8x32xf32>
    %17 = arith.mulf %16, %15 : vector<8x32xf32>
    %cst_10 = arith.constant dense<0.000000e+00> : vector<8xf32>
    %18 = vector.multi_reduction <add>, %17, %cst_10 [1] : vector<8x32xf32> to vector<8xf32>
    %19 = vector.shape_cast %18 : vector<8xf32> to vector<8x1xf32>
    %cst_11 = arith.constant 3.200000e+01 : f32
    %20 = vector.broadcast %cst_11 : f32 to vector<8x1xf32>
    %21 = arith.divf %19, %20 : vector<8x1xf32>
    %22 = arith.mulf %17, %17 : vector<8x32xf32>
    %cst_12 = arith.constant dense<0.000000e+00> : vector<8xf32>
    %23 = vector.multi_reduction <add>, %22, %cst_12 [1] : vector<8x32xf32> to vector<8xf32>
    %24 = vector.shape_cast %23 : vector<8xf32> to vector<8x1xf32>
    %cst_13 = arith.constant 3.200000e+01 : f32
    %25 = vector.broadcast %cst_13 : f32 to vector<8x1xf32>
    %26 = arith.divf %24, %25 : vector<8x1xf32>
    %27 = arith.mulf %21, %21 : vector<8x1xf32>
    %28 = arith.subf %26, %27 : vector<8x1xf32>
    %cst_14 = arith.constant 9.99999974E-6 : f32
    %29 = vector.broadcast %cst_14 : f32 to vector<8x1xf32>
    %30 = arith.addf %28, %29 : vector<8x1xf32>
    %31 = math.rsqrt %30 : vector<8x1xf32>
    %32 = vector.broadcast %21 : vector<8x1xf32> to vector<8x32xf32>
    %33 = arith.subf %17, %32 : vector<8x32xf32>
    %34 = vector.broadcast %31 : vector<8x1xf32> to vector<8x32xf32>
    %35 = vector.broadcast %1 : vector<1x32xf32> to vector<8x32xf32>
    %36 = arith.mulf %34, %35 : vector<8x32xf32>
    %37 = arith.mulf %33, %36 : vector<8x32xf32>
    %38 = vector.broadcast %2 : vector<1x32xf32> to vector<8x32xf32>
    %39 = arith.addf %37, %38 : vector<8x32xf32>
    %40 = arith.index_cast %5 : i32 to index
    %c0_15 = arith.constant 0 : index
    %41 = vector.load %arg6[%40, %c0_15] : memref<8x32xf32, #tpu.memory_space<vmem>>, vector<8x32xf32>
    tpu.vector_store %arg6[%40, %c0_15], %39 {strides = array<i32>} : memref<8x32xf32, #tpu.memory_space<vmem>>, vector<8x32xf32>,
    %c1_i32 = arith.constant 1 : i32
    return
  }
  func.func @transform_0(%arg0: i32) -> (i32, i32) {
    %c0_i32 = arith.constant 0 : i32
    %c0_i32_0 = arith.constant 0 : i32
    return %arg0, %c0_i32 : i32, i32
  }
  func.func @transform_1(%arg0: i32) -> (i32, i32) {
    %c0_i32 = arith.constant 0 : i32
    %c0_i32_0 = arith.constant 0 : i32
    %c0_i32_1 = arith.constant 0 : i32
    return %c0_i32, %c0_i32_0 : i32, i32
  }
  func.func @transform_2(%arg0: i32) -> (i32, i32) {
    %c0_i32 = arith.constant 0 : i32
    %c0_i32_0 = arith.constant 0 : i32
    %c0_i32_1 = arith.constant 0 : i32
    return %c0_i32, %c0_i32_0 : i32, i32
  }
  func.func @transform_3(%arg0: i32) -> (i32, i32) {
    %c0_i32 = arith.constant 0 : i32
    %c0_i32_0 = arith.constant 0 : i32
    %c0_i32_1 = arith.constant 0 : i32
    return %c0_i32, %c0_i32_0 : i32, i32
  }
  func.func @transform_4(%arg0: i32) -> (i32, i32) {
    %c0_i32 = arith.constant 0 : i32
    %c0_i32_0 = arith.constant 0 : i32
    %c0_i32_1 = arith.constant 0 : i32
    return %c0_i32, %c0_i32_0 : i32, i32
  }
  func.func @transform_5(%arg0: i32) -> (i32, i32) {
    %c0_i32 = arith.constant 0 : i32
    %c0_i32_0 = arith.constant 0 : i32
    return %arg0, %c0_i32 : i32, i32
  }
}

</mosaic_0001>

<llo_original>
// kernel: tpu_custom_call.1
$region0: #{tpu_custom_call.1}
  #allocation0 [shape = 'u32[]', space=smem, size = 0x4, offset = 0x4, fixed_abs, tag = 'smem constant byte address 0x4 - core index']
  #allocation1 [shape = 'u32[144,128]{1,0:T(1,128)}', space=vmem, size = 0x12000, scoped, tag = 'internal scratch']
  %s0 = inlined_call_operand.hbm [shape: f32[16,32], index: 0, kind: input, shape index: {}]
  %s1 = inlined_call_operand.hbm [shape: f32[32,32], index: 1, kind: input, shape index: {}]
  %s2 = inlined_call_operand.vmem [shape: f32[1,32], index: 2, kind: input, shape index: {}]
  %s3 = inlined_call_operand.vmem [shape: f32[1,32], index: 3, kind: input, shape index: {}]
  %s4 = inlined_call_operand.vmem [shape: f32[1,32], index: 4, kind: input, shape index: {}]
  %s5 = inlined_call_operand.hbm [shape: f32[16,32], index: 5, kind: output, shape index: {}]
  %s6 = sld [smem:[#allocation0]]
  $region61: #{tpu_custom_call.1} parent=0
    _
  %s8 = ssub.s32 1, %s6
  %s9 = scalar_select 0, %s8, %s6
  $region1: #{tpu_custom_call.1} parent=0
    #allocation2 [shape = 'u8[8192]{0}', space=vmem, size = 0x2000, scoped, tag = 'input window, operand 0']
    #allocation3 [shape = 's32[2]{0}', space=sflag, size = 0x8, scoped, tag = 'scoped memory for tpu_custom_call.1']
    #allocation4 [shape = 's32[2]{0}', space=sflag, size = 0x8, scoped, tag = 'scoped memory for tpu_custom_call.1']
    #allocation5 [shape = 'u8[16384]{0}', space=vmem, size = 0x4000, scoped, tag = 'input window, operand 1, single buffered']
    #allocation6 [shape = 's32[1]{0}', space=sflag, size = 0x4, scoped, tag = 'scoped memory for tpu_custom_call.1']
    #allocation7 [shape = 'u8[8192]{0}', space=vmem, size = 0x2000, scoped, tag = 'output window, operand 0']
    %10 = vsyncpa [#allocation3], 0
    %s11 = scalar_lea.sflag [#allocation3], 1
    %12 = vsyncpa %s11, 0
    %13 = vsyncpa [#allocation6], 0
    %14 = vsyncpa [#allocation4], 0
    %s15 = scalar_lea.sflag [#allocation4], 1
    %16 = vsyncpa %s15, 0
    loop: start=0, step=1, limit=4
    $region2: #{tpu_custom_call.1} parent=1 // loop_pre_header
      _
    $region3: #{tpu_custom_call.1} parent=1 // loop_header
      %s18 = sphi 0, %s22
      %p19 = scmp.ge.s32.totalorder %s18, 4
      %s28 = sphi 0, %s30
      %s31 = sphi 0, %s28
      %s32 = sphi 0, %s31
      %s48 = sphi 0, %s32
      %s52 = sphi 0, %s52
      %s54 = sphi 0, %s52
      %s55 = sphi 0, %s54
      %s69 = sphi 0, %s55
      %s73 = sphi 0, %s73
      %s75 = sphi 0, %s73
      %s76 = sphi 0, %s75
      %s90 = sphi 0, %s76
      %s94 = sphi 0, %s94
      %s96 = sphi 0, %s94
      %s97 = sphi 0, %s96
      %s111 = sphi 0, %s97
      %s115 = sphi 0, %s115
      %s117 = sphi 0, %s115
      %s118 = sphi 0, %s117
      %s132 = sphi 0, %s118
      %s138 = sphi 0, %s140
      %s141 = sphi 0, %s138
      %s142 = sphi 0, %s141
      %s158 = sphi 0, %s142
    $region4: #{tpu_custom_call.1} parent=1 // loop_header_branch
      %21 = sbr.rel (%p19) target = $region8
    $region5: #{tpu_custom_call.1} parent=1 // loop_body
      %s23 = ssub.s32 %s18, 1
      %s24 = ssub.s32 %s18, 2
      %s25 = sadd.s32 %s18, 1
      %s26 = ssub.s32 %s18, %s25
      %p27 = scmp.eq.s32.totalorder %s26, 0
      %s29 = sadd.s32 %s28, 1
      %s30 = scalar_select %p27, %s28, %s29
      %p33 = pneg %p27
      %p34 = scmp.eq.s32.totalorder %s18, 1
      %p35 = por %p33, %p34
      %p36 = scmp.ne.s32.totalorder %s28, %s31
      %p37 = scmp.eq.s32.totalorder %s18, 0
      %p38 = por %p36, %p37
      %p39 = scmp.ne.s32.totalorder %s28, %s31
      %p40 = scmp.eq.s32.totalorder %s23, 1
      %p41 = por %p39, %p40
      %p42 = scmp.ne.s32.totalorder %s31, %s32
      %p43 = scmp.eq.s32.totalorder %s23, 0
      %p44 = por %p42, %p43
      %p45 = scmp.ne.s32.totalorder %s31, %s32
      %p46 = scmp.eq.s32.totalorder %s24, 1
      %p47 = por %p45, %p46
      %p49 = scmp.ne.s32.totalorder %s32, %s48
      %p50 = scmp.eq.s32.totalorder %s24, 0
      %p51 = por %p49, %p50
      %s53 = sadd.s32 %s52, 1
      %p56 = scmp.eq.s32.totalorder %s18, 1
      %p57 = scmp.ne.s32.totalorder %s52, %s54
      %p58 = scmp.eq.s32.totalorder %s18, 0
      %p59 = por %p57, %p58
      %p60 = scmp.ne.s32.totalorder %s52, %s54
      %p61 = scmp.eq.s32.totalorder %s23, 1
      %p62 = por %p60, %p61
      %p63 = scmp.ne.s32.totalorder %s54, %s55
      %p64 = scmp.eq.s32.totalorder %s23, 0
      %p65 = por %p63, %p64
      %p66 = scmp.ne.s32.totalorder %s54, %s55
      %p67 = scmp.eq.s32.totalorder %s24, 1
      %p68 = por %p66, %p67
      %p70 = scmp.ne.s32.totalorder %s55, %s69
      %p71 = scmp.eq.s32.totalorder %s24, 0
      %p72 = por %p70, %p71
      %s74 = sadd.s32 %s73, 1
      %p77 = scmp.eq.s32.totalorder %s18, 1
      %p78 = scmp.ne.s32.totalorder %s73, %s75
      %p79 = scmp.eq.s32.totalorder %s18, 0
      %p80 = por %p78, %p79
      %p81 = scmp.ne.s32.totalorder %s73, %s75
      %p82 = scmp.eq.s32.totalorder %s23, 1
      %p83 = por %p81, %p82
      %p84 = scmp.ne.s32.totalorder %s75, %s76
      %p85 = scmp.eq.s32.totalorder %s23, 0
      %p86 = por %p84, %p85
      %p87 = scmp.ne.s32.totalorder %s75, %s76
      %p88 = scmp.eq.s32.totalorder %s24, 1
      %p89 = por %p87, %p88
      %p91 = scmp.ne.s32.totalorder %s76, %s90
      %p92 = scmp.eq.s32.totalorder %s24, 0
      %p93 = por %p91, %p92
      %s95 = sadd.s32 %s94, 1
      %p98 = scmp.eq.s32.totalorder %s18, 1
      %p99 = scmp.ne.s32.totalorder %s94, %s96
      %p100 = scmp.eq.s32.totalorder %s18, 0
      %p101 = por %p99, %p100
      %p102 = scmp.ne.s32.totalorder %s94, %s96
      %p103 = scmp.eq.s32.totalorder %s23, 1
      %p104 = por %p102, %p103
      %p105 = scmp.ne.s32.totalorder %s96, %s97
      %p106 = scmp.eq.s32.totalorder %s23, 0
      %p107 = por %p105, %p106
      %p108 = scmp.ne.s32.totalorder %s96, %s97
      %p109 = scmp.eq.s32.totalorder %s24, 1
      %p110 = por %p108, %p109
      %p112 = scmp.ne.s32.totalorder %s97, %s111
      %p113 = scmp.eq.s32.totalorder %s24, 0
      %p114 = por %p112, %p113
      %s116 = sadd.s32 %s115, 1
      %p119 = scmp.eq.s32.totalorder %s18, 1
      %p120 = scmp.ne.s32.totalorder %s115, %s117
      %p121 = scmp.eq.s32.totalorder %s18, 0
      %p122 = por %p120, %p121
      %p123 = scmp.ne.s32.totalorder %s115, %s117
      %p124 = scmp.eq.s32.totalorder %s23, 1
      %p125 = por %p123, %p124
      %p126 = scmp.ne.s32.totalorder %s117, %s118
      %p127 = scmp.eq.s32.totalorder %s23, 0
      %p128 = por %p126, %p127
      %p129 = scmp.ne.s32.totalorder %s117, %s118
      %p130 = scmp.eq.s32.totalorder %s24, 1
      %p131 = por %p129, %p130
      %p133 = scmp.ne.s32.totalorder %s118, %s132
      %p134 = scmp.eq.s32.totalorder %s24, 0
      %p135 = por %p133, %p134
      %s136 = ssub.s32 %s18, %s25
      %p137 = scmp.eq.s32.totalorder %s136, 0
      %s139 = sadd.s32 %s138, 1
      %s140 = scalar_select %p137, %s138, %s139
      %p143 = pneg %p137
      %p144 = scmp.eq.s32.totalorder %s18, 1
      %p145 = por %p143, %p144
      %p146 = scmp.ne.s32.totalorder %s138, %s141
      %p147 = scmp.eq.s32.totalorder %s18, 0
      %p148 = por %p146, %p147
      %p149 = scmp.ne.s32.totalorder %s138, %s141
      %p150 = scmp.eq.s32.totalorder %s23, 1
      %p151 = por %p149, %p150
      %p152 = scmp.ne.s32.totalorder %s141, %s142
      %p153 = scmp.eq.s32.totalorder %s23, 0
      %p154 = por %p152, %p153
      %p155 = scmp.ne.s32.totalorder %s141, %s142
      %p156 = scmp.eq.s32.totalorder %s24, 1
      %p157 = por %p155, %p156
      %p159 = scmp.ne.s32.totalorder %s142, %s158
      %p160 = scmp.eq.s32.totalorder %s24, 0
      %p161 = por %p159, %p160
      %p162 = scmp.le.s32.totalorder 1, %s18
      %p163 = scmp.lt.s32.totalorder %s18, 3
      %p164 = pnand %p162, %p163
      %p165 = pneg %p164
      // Predicated region
      $region9: #{tpu_custom_call.1} parent=5 // pred_check
        _
      $region10: #{tpu_custom_call.1} parent=5 // pred_check_branch
        %167 = sbr.rel (%p164) target = $region12
      $region11: #{tpu_custom_call.1} parent=5 // pred_region
        %s168 = ssub.s32 %s18, 1
        // Predicated region
        $region13: #{tpu_custom_call.1} parent=11 // pred_check
          %p169 = pneg %p65
        $region14: #{tpu_custom_call.1} parent=11 // pred_check_branch
          %171 = sbr.rel (%p169) target = $region16
        $region15: #{tpu_custom_call.1} parent=11 // pred_region
          %s173 = ssub.s32 512, 512
          %174 = vsyncadd [#allocation6], %s173
          %s175 = sshll.u32 [#allocation5], 4
          %s176 = int_to_ptr.vmem [resolvable:$true] %s175
          %181 = dma.hbm_to_vmem [thread:$0]  %s1, 512, %s176, [#allocation6], 128, 128, 8
        $region16: #{tpu_custom_call.1} parent=11 // pred_fallthru
          _
        // Predicated region
        $region17: #{tpu_custom_call.1} parent=11 // pred_check
          %p182 = pneg %p86
        $region18: #{tpu_custom_call.1} parent=11 // pred_check_branch
          %184 = sbr.rel (%p182) target = $region20
        $region19: #{tpu_custom_call.1} parent=11 // pred_region
          _
        $region20: #{tpu_custom_call.1} parent=11 // pred_fallthru
          _
        // Predicated region
        $region21: #{tpu_custom_call.1} parent=11 // pred_check
          %p185 = pneg %p107
        $region22: #{tpu_custom_call.1} parent=11 // pred_check_branch
          %187 = sbr.rel (%p185) target = $region24
        $region23: #{tpu_custom_call.1} parent=11 // pred_region
          _
        $region24: #{tpu_custom_call.1} parent=11 // pred_fallthru
          _
        // Predicated region
        $region25: #{tpu_custom_call.1} parent=11 // pred_check
          %p188 = pneg %p128
        $region26: #{tpu_custom_call.1} parent=11 // pred_check_branch
          %190 = sbr.rel (%p188) target = $region28
        $region27: #{tpu_custom_call.1} parent=11 // pred_region
          _
        $region28: #{tpu_custom_call.1} parent=11 // pred_fallthru
          _
      $region12: #{tpu_custom_call.1} parent=5 // pred_fallthru
        _
      %p191 = scmp.lt.s32.totalorder %s18, 2
      // Predicated region
      $region29: #{tpu_custom_call.1} parent=5 // pred_check
        %p192 = pneg %p191
      $region30: #{tpu_custom_call.1} parent=5 // pred_check_branch
        %194 = sbr.rel (%p192) target = $region32
      $region31: #{tpu_custom_call.1} parent=5 // pred_region
        // Predicated region
        $region33: #{tpu_custom_call.1} parent=31 // pred_check
          %p195 = pneg %p38
        $region34: #{tpu_custom_call.1} parent=31 // pred_check_branch
          %197 = sbr.rel (%p195) target = $region36
        $region35: #{tpu_custom_call.1} parent=31 // pred_region
          %s198 = sand.u32 %s28, 1
          %s199 = scalar_lea.sflag [#allocation3], %s198
          %s200 = sand.u32 %s28, 1
          %s201 = smul.addr %s200, 8
          %s202 = scalar_lea.vmem [#allocation2], %s201
          %s204 = ssub.s32 128, 128
          %205 = vsyncadd %s199, %s204
          %s206 = smul.addr %s18, 128
          %s207 = scalar_lea.hbm %s0, %s206
          %s209 = sshll.u32 %s202, 4
          %s210 = int_to_ptr.vmem [resolvable:$true] %s209
          %212 = dma.hbm_to_vmem [thread:$0]  %s207, 128, %s210, %s199
        $region36: #{tpu_custom_call.1} parent=31 // pred_fallthru
          _
      $region32: #{tpu_custom_call.1} parent=5 // pred_fallthru
        _
      %p213 = scmp.le.s32.totalorder 1, %s18
      %p214 = scmp.lt.s32.totalorder %s18, 3
      %p215 = pnand %p213, %p214
      %p216 = pneg %p215
      // Predicated region
      $region37: #{tpu_custom_call.1} parent=5 // pred_check
        _
      $region38: #{tpu_custom_call.1} parent=5 // pred_check_branch
        %218 = sbr.rel (%p215) target = $region40
      $region39: #{tpu_custom_call.1} parent=5 // pred_region
        %s219 = ssub.s32 %s18, 1
        %s220 = sand.u32 %s31, 1
        %s221 = scalar_lea.sflag [#allocation3], %s220
        %s222 = sand.u32 %s31, 1
        %s223 = smul.addr %s222, 8
        %s224 = scalar_lea.vmem [#allocation2], %s223
        // Predicated region
        $region41: #{tpu_custom_call.1} parent=39 // pred_check
          %p225 = pneg %p44
        $region42: #{tpu_custom_call.1} parent=39 // pred_check_branch
          %227 = sbr.rel (%p225) target = $region44
        $region43: #{tpu_custom_call.1} parent=39 // pred_region
          %228 = dma.done %s221, 128
        $region44: #{tpu_custom_call.1} parent=39 // pred_fallthru
          _
        // Predicated region
        $region45: #{tpu_custom_call.1} parent=39 // pred_check
          %p229 = pneg %p65
        $region46: #{tpu_custom_call.1} parent=39 // pred_check_branch
          %231 = sbr.rel (%p229) target = $region48
        $region47: #{tpu_custom_call.1} parent=39 // pred_region
          %232 = dma.done [#allocation6], 512
        $region48: #{tpu_custom_call.1} parent=39 // pred_fallthru
          _
        %s233 = sand.u32 %s31, 1
        %s234 = scalar_lea.sflag [#allocation3], %s233
        %s235 = sand.u32 %s31, 1
        %s236 = smul.addr %s235, 8
        %s237 = scalar_lea.vmem [#allocation2], %s236
        %p238 = pneg %p44
        %p239 = pneg %p41
        %p240 = pneg %p65
        %p241 = pneg %p62
        %p242 = pneg %p86
        %p243 = pneg %p83
        %p244 = pneg %p107
        %p245 = pneg %p104
        %p246 = pneg %p128
        %p247 = pneg %p125
        %p248 = pneg %p154
        %p249 = pneg %p151
        %s250 = sand.u32 %s141, 1
        %s251 = scalar_lea.sflag [#allocation4], %s250
        %s252 = sand.u32 %s141, 1
        %s253 = smul.addr %s252, 8
        %s254 = scalar_lea.vmem [#allocation7], %s253
        %v255 = vld [vmem:[%s2] sm:$0x1]
        %v256 = vld [vmem:[%s3] sm:$0x1]
        %v257 = vld [vmem:[%s4] sm:$0x1]
        %v258 = vld [vmem:[#allocation5] sm:$0xff]
        %v259 = vld [vmem:[#allocation5 + $0x8] sm:$0xff]
        %v260 = vld [vmem:[#allocation5 + $0x10] sm:$0xff]
        %v261 = vld [vmem:[#allocation5 + $0x18] sm:$0xff]
        %v262 = vld [vmem:[%s224] sm:$0xff]
        %v264 = vlaneseq
        %v265 = vshrl.u32 %v264, 7
        %v266 = vsub.s32 0, %v265
        %v267 = vrot.slane %v255, %v266
        %vm269 = vcmask 261120
        %v271 = vsel %vm269, %v262, 0
        %v274 = vsel %vm269, %v258, 0
        %v277 = vsel %vm269, %v259, 0
        %v280 = vsel %vm269, %v260, 0
        %v283 = vsel %vm269, %v261, 0
        %285 = vmatprep.subr.mxu0 0.0
        %286 = vmatpush1.xpose.msra.mxu0 %v274
        %287 = vmatprep.subr.mxu0 0.0
        %288 = vmatpush1.xpose.msra.mxu0 %v277
        %289 = vmatprep.subr.mxu0 0.0
        %290 = vmatpush1.xpose.msra.mxu0 %v280
        %291 = vmatprep.subr.mxu0 0.0
        %292 = vmatpush1.xpose.msra.mxu0 %v283
        %293 = vmatprep.subr.mxu0 0.0
        %294 = vmatpush1.xpose.msra.mxu0 0.0
        %295 = vmatprep.subr.mxu0 0.0
        %296 = vmatpush1.xpose.msra.mxu0 0.0
        %297 = vmatprep.subr.mxu0 0.0
        %298 = vmatpush1.xpose.msra.mxu0 0.0
        %299 = vmatprep.subr.mxu0 0.0
        %300 = vmatpush1.xpose.msra.mxu0 0.0
        %301 = vmatprep.subr.mxu0 0.0
        %302 = vmatpush1.xpose.msra.mxu0 0.0
        %303 = vmatprep.subr.mxu0 0.0
        %304 = vmatpush1.xpose.msra.mxu0 0.0
        %305 = vmatprep.subr.mxu0 0.0
        %306 = vmatpush1.xpose.msra.mxu0 0.0
        %307 = vmatprep.subr.mxu0 0.0
        %308 = vmatpush1.xpose.msra.mxu0 0.0
        %309 = vmatprep.subr.mxu0 0.0
        %310 = vmatpush1.xpose.msra.mxu0 0.0
        %311 = vmatprep.subr.mxu0 0.0
        %312 = vmatpush1.xpose.msra.mxu0 0.0
        %313 = vmatprep.subr.mxu0 0.0
        %314 = vmatpush1.xpose.msra.mxu0 0.0
        %315 = vmatprep.subr.mxu0 0.0
        %316 = vmatpush1.xpose.msra.mxu0 0.0
        %317 = vmatprep.subr.mxu0 0.0
        %318 = vmatpush1.xpose.msra.mxu0 0.0
        %319 = vmatprep.subr.mxu0 0.0
        %320 = vmatpush1.xpose.msra.mxu0 0.0
        %321 = vmatprep.subr.mxu0 0.0
        %322 = vmatpush1.xpose.msra.mxu0 0.0
        %323 = vmatprep.subr.mxu0 0.0
        %324 = vmatpush1.xpose.msra.mxu0 0.0
        %325 = vmatprep.subr.mxu0 0.0
        %326 = vmatpush1.xpose.msra.mxu0 0.0
        %327 = vmatprep.subr.mxu0 0.0
        %328 = vmatpush1.xpose.msra.mxu0 0.0
        %329 = vmatprep.subr.mxu0 0.0
        %330 = vmatpush1.xpose.msra.mxu0 0.0
        %331 = vmatprep.subr.mxu0 0.0
        %332 = vmatpush1.xpose.msra.mxu0 0.0
        %333 = vmatprep.subr.mxu0 0.0
        %334 = vmatpush1.xpose.msra.mxu0 0.0
        %335 = vmatprep.subr.mxu0 0.0
        %336 = vmatpush1.xpose.msra.mxu0 0.0
        %337 = vmatprep.subr.mxu0 0.0
        %338 = vmatpush1.xpose.msra.mxu0 0.0
        %339 = vmatprep.subr.mxu0 0.0
        %340 = vmatpush1.xpose.msra.mxu0 0.0
        %341 = vmatprep.subr.mxu0 0.0
        %342 = vmatpush1.xpose.msra.mxu0 0.0
        %343 = vmatprep.subr.mxu0 0.0
        %344 = vmatpush1.xpose.msra.mxu0 0.0
        %345 = vmatprep.subr.mxu0 0.0
        %346 = vmatpush1.xpose.msra.mxu0 0.0
        %347 = vmatprep.subr.mxu0 0.0
        %348 = vmatpush1.xpose.msra.mxu0 0.0
        %349 = vmatprep.mubr.f32.mxu0 0.0
        %350 = vmatmul.mubr.f32.gmra.mrb[0].mxu0 %v271
        %v351 = vpop.f32.mrb[0].mxu0
        %v352 = vadd.f32 %v267, %v351
        %v353 = vpop.f32.mrb[0].mxu0
        %354 = vdwg.mxu0
        %v355 = vmul.f32 %v352, 0.70710677
        %v356 = verf.f32.pop %v355
        %v357 = vmul.f32 %v352, %v356
        %v358 = vadd.f32 %v352, %v357
        %v359 = vmul.f32 %v358, 0.5
        %v360 = vsel %vm269, %v359, 0.0
        %361 = vadd.xlane.f32.xlu0 %v360
        %v362 = vpop.xlane.xlu0 %361
        %v363 = vrcp.pop 32.0
        %v364 = vmul.f32 %v362, %v363
        %v365 = vmul.f32 %v359, %v359
        %v366 = vsel %vm269, %v365, 0.0
        %367 = vadd.xlane.f32.xlu0 %v366
        %v368 = vpop.xlane.xlu0 %367
        %v369 = vmul.f32 %v368, %v363
        %v370 = vmul.f32 %v364, %v364
        %v371 = vsub.f32 %v369, %v370
        %v372 = vadd.f32 %v371, 1e-05
        %v373 = vrsqrt.pop %v372
        %v374 = vsub.f32 %v359, %v364
        %v376 = vlaneseq
        %v377 = vshrl.u32 %v376, 7
        %v378 = vsub.s32 0, %v377
        %v379 = vrot.slane %v256, %v378
        %v381 = vmul.f32 %v373, %v379
        %v382 = vmul.f32 %v374, %v381
        %v384 = vlaneseq
        %v385 = vshrl.u32 %v384, 7
        %v386 = vsub.s32 0, %v385
        %v387 = vrot.slane %v257, %v386
        %v389 = vadd.f32 %v382, %v387
        %390 = vst.msk [vmem:[%s254] sm:$0xff] %vm269, %v389
        %s391 = sand.u32 %s141, 1
        %s392 = scalar_lea.sflag [#allocation4], %s391
        %s393 = sand.u32 %s141, 1
        %s394 = smul.addr %s393, 8
        %s395 = scalar_lea.vmem [#allocation7], %s394
        // Predicated region
        $region49: #{tpu_custom_call.1} parent=39 // pred_check
          %p396 = pneg %p151
        $region50: #{tpu_custom_call.1} parent=39 // pred_check_branch
          %398 = sbr.rel (%p396) target = $region52
        $region51: #{tpu_custom_call.1} parent=39 // pred_region
          %s400 = ssub.s32 128, 128
          %401 = vsyncadd %s392, %s400
          %s402 = smul.addr %s23, 128
          %s403 = scalar_lea.hbm %s5, %s402
          %s405 = sshll.u32 %s395, 4
          %s406 = int_to_ptr.vmem [resolvable:$true] %s405
          %408 = dma.vmem_to_hbm [thread:$0]  %s406, 128, %s403, %s392
        $region52: #{tpu_custom_call.1} parent=39 // pred_fallthru
          _
      $region40: #{tpu_custom_call.1} parent=5 // pred_fallthru
        _
      %p409 = scmp.le.s32.totalorder 2, %s18
      // Predicated region
      $region53: #{tpu_custom_call.1} parent=5 // pred_check
        %p410 = pneg %p409
      $region54: #{tpu_custom_call.1} parent=5 // pred_check_branch
        %412 = sbr.rel (%p410) target = $region56
      $region55: #{tpu_custom_call.1} parent=5 // pred_region
        %s413 = ssub.s32 %s18, 2
        // Predicated region
        $region57: #{tpu_custom_call.1} parent=55 // pred_check
          %p414 = pneg %p157
        $region58: #{tpu_custom_call.1} parent=55 // pred_check_branch
          %416 = sbr.rel (%p414) target = $region60
        $region59: #{tpu_custom_call.1} parent=55 // pred_region
          %s417 = sand.u32 %s142, 1
          %s418 = scalar_lea.sflag [#allocation4], %s417
          %s419 = sand.u32 %s142, 1
          %s420 = smul.addr %s419, 8
          %s421 = scalar_lea.vmem [#allocation7], %s420
          %422 = dma.done %s418, 128
        $region60: #{tpu_custom_call.1} parent=55 // pred_fallthru
          _
      $region56: #{tpu_custom_call.1} parent=5 // pred_fallthru
        _
    $region6: #{tpu_custom_call.1} parent=1 // loop_footer
      %s22 = sadd.s32 1, %s18
    $region7: #{tpu_custom_call.1} parent=1 // loop_footer_branch
      %17 = sbr.rel target = $region3
    $region8: #{tpu_custom_call.1} parent=1 // loop_exit
      _
    %423 = vsyncpa [#allocation3], 1
    %s424 = scalar_lea.sflag [#allocation3], 1
    %425 = vsyncpa %s424, 1
    %426 = vsyncpa [#allocation6], 1
    %427 = vsyncpa [#allocation4], 1
    %s428 = scalar_lea.sflag [#allocation4], 1
    %429 = vsyncpa %s428, 1

</llo_original>
